<compile_context>
chip_gen: v5e
topology: v5e:2x2
jax: 0.10.0
libtpu: 0.0.40
codegen_flags: <defaults>
</compile_context>

<pallas_src>
import functools

import jax
import jax.numpy as jnp
from jax.experimental import pallas as pl
from jax.experimental.pallas import tpu as pltpu


# --------------------------------------------------------------------------
# Phase 1: global average pool + (BN-folded) 1x1 conv + shift + ReLU
# --------------------------------------------------------------------------
def _pool_conv_kernel(x_ref, w_ref, shift_ref, h_ref, pooled_ref, *,
                      hw, hw_tile, ci_tile, inv_hw, need_hw_mask, ci_is_tiled):
    """Grid: (N, n_ci, n_hw); the last two axes are reductions (C_in tiles, HW tiles).

    x_ref:      (1, ci_tile, hw_tile)  input tile (native dtype)
    w_ref:      (C_out, C_in)          BN-scale-folded 1x1 conv weight, VMEM-resident (f32)
    shift_ref:  (C_out, 1)             BN shift (f32), VMEM-resident
    h_ref:      (1, C_out, 1)          per-image pooled/conv/BN/ReLU result (f32)
    pooled_ref: (C_in, 1) f32 scratch  running spatial sum for the current image
    """
    ci = pl.program_id(1)
    k = pl.program_id(2)
    n_ci = pl.num_programs(1)
    n_hw = pl.num_programs(2)

    @pl.when(jnp.logical_and(ci == 0, k == 0))
    def _():
        pooled_ref[...] = jnp.zeros_like(pooled_ref)

    x = x_ref[0]                                              # (ci_tile, hw_tile)

    def _accumulate(tile):
        # Exact f32 spatial partial sum (lane reduction on the XLU/VPU).
        partial = jnp.sum(tile.astype(jnp.float32), axis=-1, keepdims=True)
        if ci_is_tiled:
            start = pl.multiple_of(ci * ci_tile, ci_tile)
            pooled_ref[pl.ds(start, ci_tile), :] += partial
        else:
            pooled_ref[...] += partial

    if need_hw_mask:
        # Only the last HW tile is partial; every other tile takes the unmasked path.
        @pl.when(k == n_hw - 1)
        def _():
            lane = jax.lax.broadcasted_iota(jnp.int32, x.shape, dimension=1)
            valid = (k * hw_tile + lane) < hw
            _accumulate(jnp.where(valid, x, jnp.zeros_like(x)))

        @pl.when(k != n_hw - 1)
        def _():
            _accumulate(x)
    else:
        _accumulate(x)

    # Final reduction step for this image: mean, 1x1 conv, BN shift, ReLU.
    @pl.when(jnp.logical_and(ci == n_ci - 1, k == n_hw - 1))
    def _():
        pooled = pooled_ref[...] * inv_hw                     # (C_in, 1) mean, exact f32
        # One small MXU matvec per image with the resident folded weight.
        # (Request lax.Precision.HIGHEST here if bit-parity over huge C_in matters.)
        h = jnp.dot(w_ref[...], pooled, preferred_element_type=jnp.float32)  # (C_out, 1)
        h_ref[0] = jnp.maximum(h + shift_ref[...], 0.0).astype(h_ref.dtype)


# --------------------------------------------------------------------------
# Phase 2: "bilinear upsample" of a 1x1 map == broadcast over (H, W)
# --------------------------------------------------------------------------
def _broadcast_kernel(h_ref, o_ref):
    # h_ref: (1, co_tile, 1)   o_ref: (1, co_tile, hw_tile)  (lane-dense store)
    # Cast the C_out values once, then it's a pure lane broadcast into the store block.
    h = h_ref[...].astype(o_ref.dtype)
    o_ref[...] = jnp.broadcast_to(h, o_ref.shape)


# --------------------------------------------------------------------------
# Tile planning helpers
# --------------------------------------------------------------------------
def _pick_tile(total, cap, multiple):
    """Largest divisor of `total` that is <= cap and a multiple of `multiple`; falls
    back to the full extent (always layout-legal) if no such divisor exists."""
    cap = int(cap)
    if total <= cap:
        return total
    best = 0
    for d in range(multiple, cap + 1, multiple):
        if total % d == 0:
            best = d
    return best if best > 0 else total


_X_BLOCK_TARGET = 2 * 1024 * 1024     # ~2 MiB per (double-buffered) phase-1 x block
_OUT_BLOCK_TARGET = 4 * 1024 * 1024   # ~4 MiB per phase-2 output store block
_VMEM_LIMIT = 32 * 1024 * 1024        # fits every generation (v7x scoped default)


# --------------------------------------------------------------------------
# Wrapper
# --------------------------------------------------------------------------
def image_pool(x, conv_weight, bn_gamma, bn_beta, bn_mean, bn_var, eps=1e-5,
               *, ci_tile=None, hw_tile=None):
    """x: (N, C_in, H, W).  conv_weight: (C_out, C_in, 1, 1) (PyTorch layout).

    `ci_tile` / `hw_tile` (pass both) override the phase-1 tile plan (testing/tuning);
    an explicit hw_tile < H*W must be a multiple of 128 and ci_tile must divide C_in.
    """
    N, C_in, H, W = x.shape
    C_out = conv_weight.shape[0]
    HW = H * W
    itemsize = jnp.dtype(x.dtype).itemsize

    # --- glue: fold eval-mode BN into the conv weight / a shift vector --------------
    scale = (bn_gamma.astype(jnp.float32) /
             jnp.sqrt(bn_var.astype(jnp.float32) + eps))                       # (C_out,)
    w = conv_weight.reshape(C_out, C_in).astype(jnp.float32) * scale[:, None]  # (C_out, C_in)
    shift = (bn_beta.astype(jnp.float32) -
             bn_mean.astype(jnp.float32) * scale).reshape(C_out, 1)            # (C_out, 1)

    # Flatten spatial dims so H*W maps to lanes (free: NCHW is contiguous).
    x_flat = x.reshape(N, C_in, HW)

    # --- phase-1 tile plan ------------------------------------------------------------
    if ci_tile is None and hw_tile is None:
        if C_in * HW * itemsize <= 2 * _X_BLOCK_TARGET:
            # Whole image per grid step: no HW reduction axis, no mask; a full-extent
            # block is legal even when H*W is not a multiple of 128.
            ci_tile, hw_tile = C_in, HW
        elif HW * itemsize <= _X_BLOCK_TARGET:
            # Full-HW rows; tile channels only (~2 MiB blocks).
            hw_tile = HW
            ci_tile = _pick_tile(C_in, _X_BLOCK_TARGET // (HW * itemsize), 8)
        else:
            # Very large spatial maps: lane-dense 2048-wide HW tiles.
            hw_tile = 2048
            ci_tile = _pick_tile(C_in, max(8, _X_BLOCK_TARGET // (hw_tile * itemsize)), 8)
    else:
        assert ci_tile is not None and hw_tile is not None, "pass both tile overrides"

    assert C_in % ci_tile == 0, "ci_tile must divide C_in"
    n_ci = C_in // ci_tile
    n_hw = pl.cdiv(HW, hw_tile)
    need_hw_mask = (HW % hw_tile) != 0

    kernel = functools.partial(
        _pool_conv_kernel,
        hw=HW, hw_tile=hw_tile, ci_tile=ci_tile, inv_hw=1.0 / float(HW),
        need_hw_mask=need_hw_mask, ci_is_tiled=(n_ci > 1))

    h = pl.pallas_call(
        kernel,
        out_shape=jax.ShapeDtypeStruct((N, C_out, 1), jnp.float32),
        grid=(N, n_ci, n_hw),
        in_specs=[
            pl.BlockSpec((1, ci_tile, hw_tile), lambda n, ci, k: (n, ci, k)),
            # Weight + shift: constant index map -> VMEM-resident, DMA'd once.
            pl.BlockSpec((C_out, C_in), lambda n, ci, k: (0, 0)),
            pl.BlockSpec((C_out, 1), lambda n, ci, k: (0, 0)),
        ],
        out_specs=pl.BlockSpec((1, C_out, 1), lambda n, ci, k: (n, 0, 0)),
        scratch_shapes=[pltpu.VMEM((C_in, 1), jnp.float32)],   # pooled-sum accumulator
        compiler_params=pltpu.CompilerParams(
            dimension_semantics=("parallel", "arbitrary", "arbitrary"),
            vmem_limit_bytes=_VMEM_LIMIT),
    )(x_flat, w, shift)
    # Note (v7x): for N=1 inference one TensorCore idles in phase 1; a 2-way split of
    # the HW reduction over a leading parallel axis would recover it if needed.

    # --- phase 2: broadcast the (N, C_out) vector over H*W -----------------------------
    # If the ASPP consumer can fuse the broadcast, return `h` instead and skip this
    # entirely redundant HBM write.
    hw_b_tile = HW if HW <= 8192 else 8192                     # full extent or 128-multiple
    co_tile = _pick_tile(C_out, max(1, _OUT_BLOCK_TARGET // (hw_b_tile * itemsize)), 8)
    n_co = C_out // co_tile
    n_hwb = pl.cdiv(HW, hw_b_tile)

    out_flat = pl.pallas_call(
        _broadcast_kernel,
        out_shape=jax.ShapeDtypeStruct((N, C_out, HW), x.dtype),
        grid=(N, n_co, n_hwb),
        in_specs=[pl.BlockSpec((1, co_tile, 1), lambda n, c, j: (n, c, 0))],
        out_specs=pl.BlockSpec((1, co_tile, hw_b_tile), lambda n, c, j: (n, c, j)),
        compiler_params=pltpu.CompilerParams(
            dimension_semantics=("parallel", "parallel", "parallel"),
            vmem_limit_bytes=_VMEM_LIMIT),
    )(h)

    return out_flat.reshape(N, C_out, H, W)


# --------------------------------------------------------------------------
# Pure-JAX reference
# --------------------------------------------------------------------------
def _reference(x, conv_weight, bn_gamma, bn_beta, bn_mean, bn_var, eps=1e-5):
    N, C_in, H, W = x.shape
    C_out = conv_weight.shape[0]
    pooled = jnp.mean(x.astype(jnp.float32), axis=(2, 3))              # (N, C_in)
    h = jnp.dot(pooled, conv_weight.reshape(C_out, C_in).T.astype(jnp.float32),
                precision=jax.lax.Precision.HIGHEST)                   # (N, C_out)
    h = (h - bn_mean) / jnp.sqrt(bn_var + eps) * bn_gamma + bn_beta
    h = jnp.maximum(h, 0.0)
    return jnp.broadcast_to(h[:, :, None, None], (N, C_out, H, W)).astype(x.dtype)


if __name__ == "__main__":
    key = jax.random.PRNGKey(0)
    k_x, k_w, k_g, k_b, k_m, k_v, k_x2, k_x3, k_w3 = jax.random.split(key, 9)

    # Shared BN params (C_out = 8).
    C_out = 8
    bn_gamma = jax.random.uniform(k_g, (C_out,), minval=0.5, maxval=1.5, dtype=jnp.float32)
    bn_beta = jax.random.normal(k_b, (C_out,), dtype=jnp.float32) * 0.1
    bn_mean = jax.random.normal(k_m, (C_out,), dtype=jnp.float32) * 0.1
    bn_var = jax.random.uniform(k_v, (C_out,), minval=0.5, maxval=1.5, dtype=jnp.float32)

    # Test 1: small shapes -> single full-extent block per image.
    N, C_in, H, W = 2, 4, 16, 16
    x = jax.random.normal(k_x, (N, C_in, H, W), dtype=jnp.float32)
    conv_weight = jax.random.normal(k_w, (C_out, C_in, 1, 1), dtype=jnp.float32) * 0.1
    out = jax.block_until_ready(image_pool(x, conv_weight, bn_gamma, bn_beta, bn_mean, bn_var))
    ref = _reference(x, conv_weight, bn_gamma, bn_beta, bn_mean, bn_var)
    assert out.shape == (N, C_out, H, W)
    assert jnp.allclose(out, ref, atol=1e-5, rtol=1e-5), "mismatch vs reference (16x16)"

    # Test 2: odd spatial size (DeepLab-style); still one full-extent block per image.
    H2 = W2 = 23
    x2 = jax.random.normal(k_x2, (N, C_in, H2, W2), dtype=jnp.float32)
    out2 = jax.block_until_ready(image_pool(x2, conv_weight, bn_gamma, bn_beta, bn_mean, bn_var))
    ref2 = _reference(x2, conv_weight, bn_gamma, bn_beta, bn_mean, bn_var)
    assert out2.shape == (N, C_out, H2, W2)
    assert jnp.allclose(out2, ref2, atol=1e-5, rtol=1e-5), "mismatch vs reference (23x23)"

    # Test 3: force the tiled path at small shapes (C_in tiling + partial last HW tile)
    # via explicit tile overrides -> exercises the pl.when-guarded mask and the dynamic
    # sublane slice into the pooled accumulator.
    C_in3 = 16
    x3 = jax.random.normal(k_x3, (N, C_in3, H2, W2), dtype=jnp.float32)
    conv_weight3 = jax.random.normal(k_w3, (C_out, C_in3, 1, 1), dtype=jnp.float32) * 0.1
    out3 = jax.block_until_ready(
        image_pool(x3, conv_weight3, bn_gamma, bn_beta, bn_mean, bn_var,
                   ci_tile=8, hw_tile=128))
    ref3 = _reference(x3, conv_weight3, bn_gamma, bn_beta, bn_mean, bn_var)
    assert out3.shape == (N, C_out, H2, W2)
    assert jnp.allclose(out3, ref3, atol=1e-5, rtol=1e-5), "mismatch vs reference (tiled/masked)"

    print("KERNEL_OK")
</pallas_src>

<mosaic_0001>
module attributes {stable_mosaic.version = 11 : i64} {
  func.func @_pool_conv_kernel(%arg0: i32, %arg1: i32, %arg2: i32, %arg3: memref<1x4x256xf32, #tpu.memory_space<vmem>>, %arg4: memref<8x4xf32, #tpu.memory_space<vmem>>, %arg5: memref<8x1xf32, #tpu.memory_space<vmem>>, %arg6: memref<1x8x1xf32, #tpu.memory_space<vmem>>, %arg7: memref<4x1xf32, #tpu.memory_space<vmem>>) attributes {dimension_semantics = [#tpu.dimension_semantics<parallel>, #tpu.dimension_semantics<arbitrary>, #tpu.dimension_semantics<arbitrary>], iteration_bounds = array<i64: 2, 1, 1>, scalar_prefetch = 0 : i64, scratch_operands = 1 : i64, tpu.core_type = #tpu.core_type<tc>, window_params = [{transform_indices = @transform_0, window_bounds = array<i64: 1, 4, 256>}, {pipeline_mode = #tpu.pipeline_mode<synchronous>, transform_indices = @transform_1, window_bounds = array<i64: 8, 4>}, {pipeline_mode = #tpu.pipeline_mode<synchronous>, transform_indices = @transform_2, window_bounds = array<i64: 8, 1>}, {transform_indices = @transform_3, window_bounds = array<i64: 1, 8, 1>}]} {
    %c0_i32 = arith.constant 0 : i32
    %0 = arith.cmpi eq, %arg1, %c0_i32 : i32
    %c0_i32_0 = arith.constant 0 : i32
    %1 = arith.cmpi eq, %arg2, %c0_i32_0 : i32
    %2 = arith.andi %0, %1 : i1
    %3 = arith.extui %2 : i1 to i32
    %c0_i32_1 = arith.constant 0 : i32
    %4 = arith.cmpi ne, %3, %c0_i32_1 : i32
    scf.if %4 {
      %cst_11 = arith.constant 0.000000e+00 : f32
      %17 = vector.broadcast %cst_11 : f32 to vector<4x1xf32>
      %c0_12 = arith.constant 0 : index
      %c0_13 = arith.constant 0 : index
      %18 = vector.load %arg7[%c0_12, %c0_13] : memref<4x1xf32, #tpu.memory_space<vmem>>, vector<4x1xf32>
      tpu.vector_store %arg7[%c0_12, %c0_13], %17 {strides = array<i32>} : memref<4x1xf32, #tpu.memory_space<vmem>>, vector<4x1xf32>,
    } else {
    }
    %c0 = arith.constant 0 : index
    %c0_2 = arith.constant 0 : index
    %c0_3 = arith.constant 0 : index
    %5 = vector.load %arg3[%c0, %c0_2, %c0_3] : memref<1x4x256xf32, #tpu.memory_space<vmem>>, vector<1x4x256xf32>
    %6 = vector.shape_cast %5 : vector<1x4x256xf32> to vector<4x256xf32>
    %cst = arith.constant dense<0.000000e+00> : vector<4xf32>
    %7 = vector.multi_reduction <add>, %6, %cst [1] : vector<4x256xf32> to vector<4xf32>
    %8 = vector.shape_cast %7 : vector<4xf32> to vector<4x1xf32>
    %c0_4 = arith.constant 0 : index
    %c0_5 = arith.constant 0 : index
    %9 = vector.load %arg7[%c0_4, %c0_5] : memref<4x1xf32, #tpu.memory_space<vmem>>, vector<4x1xf32>
    %10 = arith.addf %9, %8 : vector<4x1xf32>
    %c0_6 = arith.constant 0 : index
    %c0_7 = arith.constant 0 : index
    %11 = vector.load %arg7[%c0_6, %c0_7] : memref<4x1xf32, #tpu.memory_space<vmem>>, vector<4x1xf32>
    tpu.vector_store %arg7[%c0_6, %c0_7], %10 {strides = array<i32>} : memref<4x1xf32, #tpu.memory_space<vmem>>, vector<4x1xf32>,
    %c0_i32_8 = arith.constant 0 : i32
    %12 = arith.cmpi eq, %arg1, %c0_i32_8 : i32
    %c0_i32_9 = arith.constant 0 : i32
    %13 = arith.cmpi eq, %arg2, %c0_i32_9 : i32
    %14 = arith.andi %12, %13 : i1
    %15 = arith.extui %14 : i1 to i32
    %c0_i32_10 = arith.constant 0 : i32
    %16 = arith.cmpi ne, %15, %c0_i32_10 : i32
    scf.if %16 {
      %c0_11 = arith.constant 0 : index
      %c0_12 = arith.constant 0 : index
      %17 = vector.load %arg7[%c0_11, %c0_12] : memref<4x1xf32, #tpu.memory_space<vmem>>, vector<4x1xf32>
      %cst_13 = arith.constant 3.906250e-03 : f32
      %18 = vector.broadcast %cst_13 : f32 to vector<4x1xf32>
      %19 = arith.mulf %17, %18 : vector<4x1xf32>
      %c0_14 = arith.constant 0 : index
      %c0_15 = arith.constant 0 : index
      %20 = vector.load %arg4[%c0_14, %c0_15] : memref<8x4xf32, #tpu.memory_space<vmem>>, vector<8x4xf32>
      %cst_16 = arith.constant dense<0.000000e+00> : vector<8x1xf32>
      %21 = tpu.matmul %20, %19, %cst_16 {dimension_numbers = #tpu.dot_dimension_numbers<[1], [0], [0], [1], [0, 0, 1, 1], [], []>} : vector<8x4xf32>, vector<4x1xf32>, vector<8x1xf32> -> vector<8x1xf32>
      %c0_17 = arith.constant 0 : index
      %c0_18 = arith.constant 0 : index
      %22 = vector.load %arg5[%c0_17, %c0_18] : memref<8x1xf32, #tpu.memory_space<vmem>>, vector<8x1xf32>
      %23 = arith.addf %21, %22 : vector<8x1xf32>
      %cst_19 = arith.constant 0.000000e+00 : f32
      %24 = vector.broadcast %cst_19 : f32 to vector<8x1xf32>
      %25 = arith.maximumf %23, %24 : vector<8x1xf32>
      %c0_20 = arith.constant 0 : index
      %c0_21 = arith.constant 0 : index
      %c0_22 = arith.constant 0 : index
      %26 = vector.load %arg6[%c0_20, %c0_21, %c0_22] : memref<1x8x1xf32, #tpu.memory_space<vmem>>, vector<1x8x1xf32>
      %27 = vector.shape_cast %26 : vector<1x8x1xf32> to vector<8x1xf32>
      %28 = vector.shape_cast %25 : vector<8x1xf32> to vector<1x8x1xf32>
      tpu.vector_store %arg6[%c0_20, %c0_21, %c0_22], %28 {strides = array<i32>} : memref<1x8x1xf32, #tpu.memory_space<vmem>>, vector<1x8x1xf32>,
    } else {
    }
    return
  }
  func.func @transform_0(%arg0: i32, %arg1: i32, %arg2: i32) -> (i32, i32, i32) {
    %c0_i32 = arith.constant 0 : i32
    return %arg0, %arg1, %arg2 : i32, i32, i32
  }
  func.func @transform_1(%arg0: i32, %arg1: i32, %arg2: i32) -> (i32, i32) {
    %c0_i32 = arith.constant 0 : i32
    %c0_i32_0 = arith.constant 0 : i32
    %c0_i32_1 = arith.constant 0 : i32
    return %c0_i32, %c0_i32_0 : i32, i32
  }
  func.func @transform_2(%arg0: i32, %arg1: i32, %arg2: i32) -> (i32, i32) {
    %c0_i32 = arith.constant 0 : i32
    %c0_i32_0 = arith.constant 0 : i32
    %c0_i32_1 = arith.constant 0 : i32
    return %c0_i32, %c0_i32_0 : i32, i32
  }
  func.func @transform_3(%arg0: i32, %arg1: i32, %arg2: i32) -> (i32, i32, i32) {
    %c0_i32 = arith.constant 0 : i32
    %c0_i32_0 = arith.constant 0 : i32
    %c0_i32_1 = arith.constant 0 : i32
    return %arg0, %c0_i32, %c0_i32_0 : i32, i32, i32
  }
}

</mosaic_0001>

<llo_original>
// kernel: tpu_custom_call.1
$region0: #{tpu_custom_call.1}
  #allocation0 [shape = 'u32[]', space=smem, size = 0x4, offset = 0x4, fixed_abs, tag = 'smem constant byte address 0x4 - core index']
  #allocation1 [shape = 'u32[72,128]{1,0:T(1,128)}', space=vmem, size = 0x9000, scoped, tag = 'internal scratch']
  #allocation2 [shape = 'f32[4,1]{1,0:T(4,128)}', space=vmem, size = 0x800, scoped, tag = 'scratch operand']
  %s0 = inlined_call_operand.vmem [shape: f32[2,4,256], index: 0, kind: input, shape index: {}]
  %s1 = inlined_call_operand.vmem [shape: f32[8,4], index: 1, kind: input, shape index: {}]
  %s2 = inlined_call_operand.vmem [shape: f32[8,1], index: 2, kind: input, shape index: {}]
  %s3 = inlined_call_operand.vmem [shape: f32[2,8,1], index: 3, kind: output, shape index: {}]
  %s4 = sld [smem:[#allocation0]]
  $region53: #{tpu_custom_call.1} parent=0
    _
  %s6 = ssub.s32 1, %s4
  %s7 = scalar_select 0, %s6, %s4
  loop: start=0, step=1, limit=4
  $region2: #{tpu_custom_call.1} parent=0 // loop_pre_header
    _
  $region3: #{tpu_custom_call.1} parent=0 // loop_header
    %s9 = sphi 0, %s13
    %p10 = scmp.ge.s32.totalorder %s9, 4
    %s16 = sphi 0, %s35
    %s17 = sphi 0, %s31
    %s18 = sphi 0, %s27
    %s19 = sphi 0, %s16
    %s20 = sphi 0, %s17
    %s21 = sphi 0, %s18
    %s22 = sphi 0, %s19
    %s23 = sphi 0, %s20
    %s24 = sphi 0, %s21
    %s42 = sphi 0, %s44
    %s45 = sphi 0, %s42
    %s46 = sphi 0, %s45
    %s62 = sphi 0, %s46
    %s66 = sphi 0, %s66
    %s68 = sphi 0, %s66
    %s69 = sphi 0, %s68
    %s83 = sphi 0, %s69
    %s87 = sphi 0, %s87
    %s89 = sphi 0, %s87
    %s90 = sphi 0, %s89
    %s104 = sphi 0, %s90
    %s110 = sphi 0, %s112
    %s113 = sphi 0, %s110
    %s114 = sphi 0, %s113
    %s130 = sphi 0, %s114
  $region4: #{tpu_custom_call.1} parent=0 // loop_header_branch
    %12 = sbr.rel (%p10) target = $region8
  $region5: #{tpu_custom_call.1} parent=0 // loop_body
    %s14 = ssub.s32 %s9, 1
    %s15 = ssub.s32 %s9, 2
    %s25 = sadd.s32 1, %s18
    %p26 = scmp.ge.s32.totalorder %s25, 1
    %s27 = scalar_select %p26, 0, %s25
    %s28 = sadd.s32 1, %s17
    %s29 = scalar_select %p26, %s28, %s17
    %p30 = scmp.ge.s32.totalorder %s29, 1
    %s31 = scalar_select %p30, 0, %s29
    %s32 = sadd.s32 1, %s16
    %s33 = scalar_select %p30, %s32, %s16
    %p34 = scmp.ge.s32.totalorder %s33, 2
    %s35 = scalar_select %p34, 0, %s33
    %s36 = ssub.s32 %s16, %s35
    %s37 = ssub.s32 %s17, %s31
    %s38 = sor.u32 %s36, %s37
    %s39 = ssub.s32 %s18, %s27
    %s40 = sor.u32 %s38, %s39
    %p41 = scmp.eq.s32.totalorder %s40, 0
    %s43 = sadd.s32 %s42, 1
    %s44 = scalar_select %p41, %s42, %s43
    %p47 = pneg %p41
    %p48 = scmp.eq.s32.totalorder %s9, 1
    %p49 = por %p47, %p48
    %p50 = scmp.ne.s32.totalorder %s42, %s45
    %p51 = scmp.eq.s32.totalorder %s9, 0
    %p52 = por %p50, %p51
    %p53 = scmp.ne.s32.totalorder %s42, %s45
    %p54 = scmp.eq.s32.totalorder %s14, 1
    %p55 = por %p53, %p54
    %p56 = scmp.ne.s32.totalorder %s45, %s46
    %p57 = scmp.eq.s32.totalorder %s14, 0
    %p58 = por %p56, %p57
    %p59 = scmp.ne.s32.totalorder %s45, %s46
    %p60 = scmp.eq.s32.totalorder %s15, 1
    %p61 = por %p59, %p60
    %p63 = scmp.ne.s32.totalorder %s46, %s62
    %p64 = scmp.eq.s32.totalorder %s15, 0
    %p65 = por %p63, %p64
    %s67 = sadd.s32 %s66, 1
    %p70 = scmp.eq.s32.totalorder %s9, 1
    %p71 = scmp.ne.s32.totalorder %s66, %s68
    %p72 = scmp.eq.s32.totalorder %s9, 0
    %p73 = por %p71, %p72
    %p74 = scmp.ne.s32.totalorder %s66, %s68
    %p75 = scmp.eq.s32.totalorder %s14, 1
    %p76 = por %p74, %p75
    %p77 = scmp.ne.s32.totalorder %s68, %s69
    %p78 = scmp.eq.s32.totalorder %s14, 0
    %p79 = por %p77, %p78
    %p80 = scmp.ne.s32.totalorder %s68, %s69
    %p81 = scmp.eq.s32.totalorder %s15, 1
    %p82 = por %p80, %p81
    %p84 = scmp.ne.s32.totalorder %s69, %s83
    %p85 = scmp.eq.s32.totalorder %s15, 0
    %p86 = por %p84, %p85
    %s88 = sadd.s32 %s87, 1
    %p91 = scmp.eq.s32.totalorder %s9, 1
    %p92 = scmp.ne.s32.totalorder %s87, %s89
    %p93 = scmp.eq.s32.totalorder %s9, 0
    %p94 = por %p92, %p93
    %p95 = scmp.ne.s32.totalorder %s87, %s89
    %p96 = scmp.eq.s32.totalorder %s14, 1
    %p97 = por %p95, %p96
    %p98 = scmp.ne.s32.totalorder %s89, %s90
    %p99 = scmp.eq.s32.totalorder %s14, 0
    %p100 = por %p98, %p99
    %p101 = scmp.ne.s32.totalorder %s89, %s90
    %p102 = scmp.eq.s32.totalorder %s15, 1
    %p103 = por %p101, %p102
    %p105 = scmp.ne.s32.totalorder %s90, %s104
    %p106 = scmp.eq.s32.totalorder %s15, 0
    %p107 = por %p105, %p106
    %s108 = ssub.s32 %s16, %s35
    %p109 = scmp.eq.s32.totalorder %s108, 0
    %s111 = sadd.s32 %s110, 1
    %s112 = scalar_select %p109, %s110, %s111
    %p115 = pneg %p109
    %p116 = scmp.eq.s32.totalorder %s9, 1
    %p117 = por %p115, %p116
    %p118 = scmp.ne.s32.totalorder %s110, %s113
    %p119 = scmp.eq.s32.totalorder %s9, 0
    %p120 = por %p118, %p119
    %p121 = scmp.ne.s32.totalorder %s110, %s113
    %p122 = scmp.eq.s32.totalorder %s14, 1
    %p123 = por %p121, %p122
    %p124 = scmp.ne.s32.totalorder %s113, %s114
    %p125 = scmp.eq.s32.totalorder %s14, 0
    %p126 = por %p124, %p125
    %p127 = scmp.ne.s32.totalorder %s113, %s114
    %p128 = scmp.eq.s32.totalorder %s15, 1
    %p129 = por %p127, %p128
    %p131 = scmp.ne.s32.totalorder %s114, %s130
    %p132 = scmp.eq.s32.totalorder %s15, 0
    %p133 = por %p131, %p132
    %p134 = scmp.le.s32.totalorder 1, %s9
    %p135 = scmp.lt.s32.totalorder %s9, 3
    %p136 = pnand %p134, %p135
    %p137 = pneg %p136
    // Predicated region
    $region9: #{tpu_custom_call.1} parent=5 // pred_check
      _
    $region10: #{tpu_custom_call.1} parent=5 // pred_check_branch
      %139 = sbr.rel (%p136) target = $region12
    $region11: #{tpu_custom_call.1} parent=5 // pred_region
      %s140 = ssub.s32 %s9, 1
      // Predicated region
      $region13: #{tpu_custom_call.1} parent=11 // pred_check
        %p141 = pneg %p79
      $region14: #{tpu_custom_call.1} parent=11 // pred_check_branch
        %143 = sbr.rel (%p141) target = $region16
      $region15: #{tpu_custom_call.1} parent=11 // pred_region
        _
      $region16: #{tpu_custom_call.1} parent=11 // pred_fallthru
        _
      // Predicated region
      $region17: #{tpu_custom_call.1} parent=11 // pred_check
        %p144 = pneg %p100
      $region18: #{tpu_custom_call.1} parent=11 // pred_check_branch
        %146 = sbr.rel (%p144) target = $region20
      $region19: #{tpu_custom_call.1} parent=11 // pred_region
        _
      $region20: #{tpu_custom_call.1} parent=11 // pred_fallthru
        _
    $region12: #{tpu_custom_call.1} parent=5 // pred_fallthru
      _
    %p147 = scmp.lt.s32.totalorder %s9, 2
    // Predicated region
    $region21: #{tpu_custom_call.1} parent=5 // pred_check
      %p148 = pneg %p147
    $region22: #{tpu_custom_call.1} parent=5 // pred_check_branch
      %150 = sbr.rel (%p148) target = $region24
    $region23: #{tpu_custom_call.1} parent=5 // pred_region
      // Predicated region
      $region25: #{tpu_custom_call.1} parent=23 // pred_check
        %p151 = pneg %p52
      $region26: #{tpu_custom_call.1} parent=23 // pred_check_branch
        %153 = sbr.rel (%p151) target = $region28
      $region27: #{tpu_custom_call.1} parent=23 // pred_region
        %s154 = smul.u32 2, %s18
        %p155 = scmp.lt.s32.totalorder %s16, 1
        %s156 = scalar_select %p155, %s16, 1
        %p157 = scmp.lt.s32.totalorder %s17, 0
        %s158 = scalar_select %p157, %s17, 0
        %p159 = scmp.lt.s32.totalorder %s154, 1
        %s160 = scalar_select %p159, %s154, 1
        %s161 = smul.addr %s158, 2
        %s162 = sadd.s32 %s160, %s161
        %s163 = smul.addr %s156, 2
        %s164 = sadd.s32 %s162, %s163
        %s165 = smul.addr %s164, 4
        %s166 = scalar_lea.vmem %s0, %s165
        %s167 = smul.u32 2, %s18
      $region28: #{tpu_custom_call.1} parent=23 // pred_fallthru
        _
    $region24: #{tpu_custom_call.1} parent=5 // pred_fallthru
      _
    %p168 = scmp.le.s32.totalorder 1, %s9
    %p169 = scmp.lt.s32.totalorder %s9, 3
    %p170 = pnand %p168, %p169
    %p171 = pneg %p170
    // Predicated region
    $region29: #{tpu_custom_call.1} parent=5 // pred_check
      _
    $region30: #{tpu_custom_call.1} parent=5 // pred_check_branch
      %173 = sbr.rel (%p170) target = $region32
    $region31: #{tpu_custom_call.1} parent=5 // pred_region
      %s174 = ssub.s32 %s9, 1
      %s175 = smul.u32 2, %s21
      %p176 = scmp.lt.s32.totalorder %s19, 1
      %s177 = scalar_select %p176, %s19, 1
      %p178 = scmp.lt.s32.totalorder %s20, 0
      %s179 = scalar_select %p178, %s20, 0
      %p180 = scmp.lt.s32.totalorder %s175, 1
      %s181 = scalar_select %p180, %s175, 1
      %s182 = smul.addr %s179, 2
      %s183 = sadd.s32 %s181, %s182
      %s184 = smul.addr %s177, 2
      %s185 = sadd.s32 %s183, %s184
      %s186 = smul.addr %s185, 4
      %s187 = scalar_lea.vmem %s0, %s186
      %p188 = pneg %p58
      %p189 = pneg %p55
      %p190 = pneg %p79
      %p191 = pneg %p76
      %p192 = pneg %p100
      %p193 = pneg %p97
      %p194 = pneg %p126
      %p195 = pneg %p123
      %p196 = scmp.lt.s32.totalorder %s19, 1
      %s197 = scalar_select %p196, %s19, 1
      %s198 = smul.addr %s197, 8
      %s199 = scalar_lea.vmem %s3, %s198
      %s200 = smul.u32 2, %s21
      %p201 = scmp.lt.s32.totalorder %s19, 1
      %s202 = scalar_select %p201, %s19, 1
      %p203 = scmp.lt.s32.totalorder %s20, 0
      %s204 = scalar_select %p203, %s20, 0
      %p205 = scmp.lt.s32.totalorder %s200, 1
      %s206 = scalar_select %p205, %s200, 1
      %s207 = smul.addr %s204, 2
      %s208 = sadd.s32 %s206, %s207
      %s209 = smul.addr %s202, 2
      %s210 = sadd.s32 %s208, %s209
      %s211 = smul.addr %s210, 4
      %s212 = scalar_lea.vmem %s0, %s211
      %s213 = smul.u32 2, %s21
      %p214 = scmp.lt.s32.totalorder %s19, 1
      %s215 = scalar_select %p214, %s19, 1
      %s216 = smul.addr %s215, 8
      %s217 = scalar_lea.vmem %s3, %s216
      %p218 = scmp.eq.s32.totalorder %s20, 0
      %p219 = scmp.eq.s32.totalorder %s21, 0
      %p220 = pnand %p218, %p219
      %p221 = pneg %p220
      // Predicated region
      $region33: #{tpu_custom_call.1} parent=31 // pred_check
        _
      $region34: #{tpu_custom_call.1} parent=31 // pred_check_branch
        %223 = sbr.rel (%p220) target = $region36
      $region35: #{tpu_custom_call.1} parent=31 // pred_region
        %vm224 = vcmask 3072
        %225 = vst.msk [vmem:[#allocation2] sm:$0xf] %vm224, 0.0
      $region36: #{tpu_custom_call.1} parent=31 // pred_fallthru
        _
      %v226 = vld [vmem:[%s212] sm:$0xff]
      %228 = vst [vmem:[#allocation1] ss:$2 sm:$0xff] %v226
      %v229 = vld.sshfl [vmem:[#allocation1] sm:$0xff pattern:$0x75316420]
      %v230 = vld.sshfl [vmem:[#allocation1 + $0x8] sm:$0xff pattern:$0x75316420]
      %vm233 = vcmask 1043456
      %v234 = vsel %vm233, %v229, 0.0
      %v235 = vsel %vm233, %v230, 0.0
      %v236 = vadd.f32 %v234, %v235
      %237 = vadd.xlane.f32.xlu0 %v236
      %v238 = vpop.xlane.xlu0 %237
      %v239 = vld [vmem:[#allocation2] sm:$0xf]
      %v240 = vadd.f32 %v239, %v238
      %vm241 = vcmask 3072
      %242 = vst.msk [vmem:[#allocation2] sm:$0xf] %vm241, %v240
      // Predicated region
      $region37: #{tpu_custom_call.1} parent=31 // pred_check
        _
      $region38: #{tpu_custom_call.1} parent=31 // pred_check_branch
        %244 = sbr.rel (%p220) target = $region40
      $region39: #{tpu_custom_call.1} parent=31 // pred_region
        %v245 = vld [vmem:[#allocation2] sm:$0xf]
        %v246 = vmul.f32 %v245, 0.00390625
        %v247 = vld [vmem:[%s1] sm:$0xff]
        %v248 = vld [vmem:[%s2] sm:$0xff]
        %vm249 = vcmask 31744
        %v251 = vsel %vm249, %v247, 0
        %v254 = vsel %vm233, %v246, 0
        %256 = vmatpush.msra.mxu0 0.0
        %257 = vmatpush.msra.mxu0 0.0
        %258 = vmatpush.msra.mxu0 0.0
        %259 = vmatpush.msra.mxu0 0.0
        %260 = vmatpush.msra.mxu0 0.0
        %261 = vmatpush.msra.mxu0 0.0
        %262 = vmatpush.msra.mxu0 0.0
        %263 = vmatpush.msra.mxu0 0.0
        %264 = vmatpush.msra.mxu0 0.0
        %265 = vmatpush.msra.mxu0 0.0
        %266 = vmatpush.msra.mxu0 0.0
        %267 = vmatpush.msra.mxu0 0.0
        %268 = vmatpush.msra.mxu0 0.0
        %269 = vmatpush.msra.mxu0 0.0
        %270 = vmatpush.msra.mxu0 0.0
        %271 = vmatpush.msra.mxu0 %v254
        %272 = vmatmul.f32.gmra.mxu0 %v251
        %v273 = vpop.f32.mrf.mxu0
        %v274 = vadd.f32 %v248, %v273
        %275 = vdwg.mxu0
        %v276 = vmax.f32 %v274, 0.0
        %vm277 = vcmask 7168
        %278 = vst.msk [vmem:[%s217] sm:$0xff] %vm277, %v276
      $region40: #{tpu_custom_call.1} parent=31 // pred_fallthru
        _
      %p279 = scmp.lt.s32.totalorder %s19, 1
      %s280 = scalar_select %p279, %s19, 1
      %s281 = smul.addr %s280, 8
      %s282 = scalar_lea.vmem %s3, %s281
      // Predicated region
      $region41: #{tpu_custom_call.1} parent=31 // pred_check
        %p283 = pneg %p123
      $region42: #{tpu_custom_call.1} parent=31 // pred_check_branch
        %285 = sbr.rel (%p283) target = $region44
      $region43: #{tpu_custom_call.1} parent=31 // pred_region
        _
      $region44: #{tpu_custom_call.1} parent=31 // pred_fallthru
        _
    $region32: #{tpu_custom_call.1} parent=5 // pred_fallthru
      _
    %p286 = scmp.le.s32.totalorder 2, %s9
    // Predicated region
    $region45: #{tpu_custom_call.1} parent=5 // pred_check
      %p287 = pneg %p286
    $region46: #{tpu_custom_call.1} parent=5 // pred_check_branch
      %289 = sbr.rel (%p287) target = $region48
    $region47: #{tpu_custom_call.1} parent=5 // pred_region
      %s290 = ssub.s32 %s9, 2
      // Predicated region
      $region49: #{tpu_custom_call.1} parent=47 // pred_check
        %p291 = pneg %p129
      $region50: #{tpu_custom_call.1} parent=47 // pred_check_branch
        %293 = sbr.rel (%p291) target = $region52
      $region51: #{tpu_custom_call.1} parent=47 // pred_region
        %p294 = scmp.lt.s32.totalorder %s22, 1
        %s295 = scalar_select %p294, %s22, 1
        %s296 = smul.addr %s295, 8
        %s297 = scalar_lea.vmem %s3, %s296
      $region52: #{tpu_custom_call.1} parent=47 // pred_fallthru
        _
    $region48: #{tpu_custom_call.1} parent=5 // pred_fallthru
      _
  $region6: #{tpu_custom_call.1} parent=0 // loop_footer
    %s13 = sadd.s32 1, %s9
  $region7: #{tpu_custom_call.1} parent=0 // loop_footer_branch
    %8 = sbr.rel target = $region3
  $region8: #{tpu_custom_call.1} parent=0 // loop_exit
    _

</llo_original>
